<compile_context>
chip_gen: v7x
topology: tpu7x:2x2x1
jax: 0.10.0
libtpu: 0.0.40
codegen_flags: <defaults>
</compile_context>

<pallas_src>
import jax
import jax.numpy as jnp
from jax import lax
from jax.experimental import pallas as pl
from jax.experimental.pallas import tpu as pltpu


# ---------------- configuration (small synthetic stand-in shapes) -----------
B = 2            # batch
CIN = 4          # input channels (NCHW channel dim)
H = W = 16       # spatial
KH = KW = 3      # conv-stem kernel
CF = 64          # backbone feature channels (stand-in for EffNet-b3's 1536)
EMB = 32         # embedding size (stand-in for 512)

K_RAW = KH * KW * CIN      # 36   im2col contraction dim (fed unpadded)
EMBP = 128                 # lane-padded embedding dim
OUT_ROWS = 8               # output rows rounded up to a full sublane group
ROWS = B * H * W           # 512  im2col rows (batch folded into the block)


# ---------------- fused forward kernel ---------------------------------------
def _fused_forward_kernel(p_ref, wc_ref, pool_ref, wf_ref, b_ref, o_ref):
    # p_ref   : (ROWS, K_RAW)     bf16 im2col patches (unpadded K)
    # wc_ref  : (K_RAW, CF)       bf16 conv-stem weight, im2col layout
    # pool_ref: (OUT_ROWS, ROWS)  f32  static block-diagonal GAP matrix
    # wf_ref  : (CF, EMBP)        f32  fc weight (cols >= EMB are zero)
    # b_ref   : (1, EMBP)         f32  fc bias   (cols >= EMB are zero)
    # o_ref   : (OUT_ROWS, EMBP)  f32  L2-normalized embeddings

    # Conv stem as ONE im2col matmul on the MXU (bf16 in, f32 accumulate).
    acc = jnp.dot(p_ref[...], wc_ref[...],
                  preferred_element_type=jnp.float32)             # (ROWS, CF)

    # Swish / SiLU over the live CF lanes only (sigmoid -> EUP).
    act = acc * jax.nn.sigmoid(acc)

    # Global average pool per batch item on the MXU via the precomputed
    # block-diagonal pooling matrix (pool[b, r] = 1/(H*W) iff row r is in b).
    feats = jnp.dot(pool_ref[...], act,
                    preferred_element_type=jnp.float32)           # (OUT_ROWS, CF)

    # fc + bias ("flatten" is implicit: pooled features are already 2-D).
    y = jnp.dot(feats, wf_ref[...],
                preferred_element_type=jnp.float32) + b_ref[...]  # (OUT_ROWS, EMBP)

    # F.normalize(p=2, dim=1, eps=1e-12): y / max(||y||, eps)
    #   == y * rsqrt(max(sum(y^2), eps^2));  rsqrt goes to the EUP.
    sumsq = jnp.sum(y * y, axis=1, keepdims=True)
    o_ref[...] = y * lax.rsqrt(jnp.maximum(sumsq, 1e-24))


# ---------------- full forward -----------------------------------------------
@jax.jit
def capsule_verification_forward(x_nchw, w_conv_bf16, pool, w_fc_p, b_fc_p):
    # im2col straight from the NCHW input; "SAME" 3x3 padding handled inside
    # the patch extraction.  Feature dim is channel-major (C, KH, KW) — the
    # synthetic conv weight below uses the same layout.
    patches = lax.conv_general_dilated_patches(
        x_nchw.astype(jnp.float32), (KH, KW), (1, 1), "SAME",
        dimension_numbers=("NCHW", "OIHW", "NHWC"))          # (B, H, W, K_RAW)
    patches = patches.reshape(ROWS, K_RAW).astype(jnp.bfloat16)

    vmem = pl.BlockSpec(memory_space=pltpu.MemorySpace.VMEM)
    emb_pad = pl.pallas_call(
        _fused_forward_kernel,
        out_shape=jax.ShapeDtypeStruct((OUT_ROWS, EMBP), jnp.float32),
        in_specs=[vmem, vmem, vmem, vmem, vmem],
        out_specs=vmem,
    )(patches, w_conv_bf16, pool, w_fc_p, b_fc_p)

    return emb_pad[:B, :EMB]


# ---------------- pure-JAX reference (same math, unpadded f32) ---------------
def _reference_forward(x_nchw, w_conv, w_fc, b_fc):
    p = lax.conv_general_dilated_patches(
        x_nchw.astype(jnp.float32), (KH, KW), (1, 1), "SAME",
        dimension_numbers=("NCHW", "OIHW", "NHWC")).reshape(ROWS, K_RAW)
    a = jnp.dot(p, w_conv, precision=lax.Precision.HIGHEST)
    a = a * jax.nn.sigmoid(a)
    f = a.reshape(B, H * W, CF).mean(axis=1)
    y = jnp.dot(f, w_fc, precision=lax.Precision.HIGHEST) + b_fc
    n = jnp.sqrt(jnp.sum(y * y, axis=1, keepdims=True))
    return y / jnp.maximum(n, 1e-12)


# ---------------- main --------------------------------------------------------
if __name__ == "__main__":
    key = jax.random.PRNGKey(0)
    k_x, k_wc, k_wf, k_bf = jax.random.split(key, 4)

    # deterministic synthetic inputs / parameters (no checkpoint loading)
    x = jax.random.normal(k_x, (B, CIN, H, W), jnp.float32)            # NCHW
    w_conv = jax.random.normal(k_wc, (K_RAW, CF), jnp.float32) * 0.1   # im2col layout
    w_fc = jax.random.normal(k_wf, (CF, EMB), jnp.float32) * 0.1
    b_fc = jax.random.normal(k_bf, (EMB,), jnp.float32) * 0.01

    # one-time parameter prep outside jit:
    #  * conv-stem weight to bf16 (the one big matmul operand)
    #  * fc weight / bias lane-padded to 128 columns (pad region zero)
    #  * static block-diagonal GAP pooling matrix, sublane-rounded to 8 rows
    w_conv_bf16 = w_conv.astype(jnp.bfloat16)
    w_fc_p = jnp.zeros((CF, EMBP), jnp.float32).at[:, :EMB].set(w_fc)
    b_fc_p = jnp.zeros((1, EMBP), jnp.float32).at[0, :EMB].set(b_fc)
    row_idx = jnp.arange(ROWS)
    pool = jnp.zeros((OUT_ROWS, ROWS), jnp.float32).at[
        row_idx // (H * W), row_idx].set(1.0 / (H * W))

    # TODO(synk): the real EfficientNet-b3 backbone (stride-2 stem, BatchNorm,
    # SE, MBConv stack, pretrained weights) is not reproduced; it is
    # represented by the fused conv-stem + swish + global-average-pool stage.
    out = capsule_verification_forward(x, w_conv_bf16, pool, w_fc_p, b_fc_p)
    out = jax.block_until_ready(out)
    assert out.shape == (B, EMB)

    # correctness vs. pure-JAX f32 reference of the same math
    # (kernel uses bf16 matmul inputs with f32 accumulation -> 1e-2 tolerance)
    ref = _reference_forward(x, w_conv, w_fc, b_fc)
    assert bool(jnp.allclose(out, ref, atol=1e-2, rtol=1e-2))

    # rows are unit-norm after the F.normalize equivalent (done in f32)
    norms = jnp.sqrt(jnp.sum(out * out, axis=1))
    assert bool(jnp.all(jnp.abs(norms - 1.0) < 1e-4))

    print("KERNEL_OK")
</pallas_src>

<mosaic_0001>
module attributes {stable_mosaic.version = 11 : i64} {
  func.func @_fused_forward_kernel(%arg0: memref<512x36xbf16, #tpu.memory_space<vmem>>, %arg1: memref<36x64xbf16, #tpu.memory_space<vmem>>, %arg2: memref<8x512xf32, #tpu.memory_space<vmem>>, %arg3: memref<64x128xf32, #tpu.memory_space<vmem>>, %arg4: memref<1x128xf32, #tpu.memory_space<vmem>>, %arg5: memref<8x128xf32, #tpu.memory_space<vmem>>) attributes {dimension_semantics = [], scalar_prefetch = 0 : i64, scratch_operands = 0 : i64, tpu.core_type = #tpu.core_type<tc>} {
    %c0 = arith.constant 0 : index
    %c0_0 = arith.constant 0 : index
    %0 = vector.load %arg0[%c0, %c0_0] : memref<512x36xbf16, #tpu.memory_space<vmem>>, vector<512x36xbf16>
    %c0_1 = arith.constant 0 : index
    %c0_2 = arith.constant 0 : index
    %1 = vector.load %arg1[%c0_1, %c0_2] : memref<36x64xbf16, #tpu.memory_space<vmem>>, vector<36x64xbf16>
    %cst = arith.constant dense<0.000000e+00> : vector<512x64xf32>
    %2 = tpu.matmul %0, %1, %cst {dimension_numbers = #tpu.dot_dimension_numbers<[1], [0], [0], [1], [0, 0, 1, 1], [], []>} : vector<512x36xbf16>, vector<36x64xbf16>, vector<512x64xf32> -> vector<512x64xf32>
    %3 = arith.negf %2 : vector<512x64xf32>
    %4 = math.exp %3 : vector<512x64xf32>
    %cst_3 = arith.constant 1.000000e+00 : f32
    %5 = vector.broadcast %cst_3 : f32 to vector<512x64xf32>
    %6 = arith.addf %5, %4 : vector<512x64xf32>
    %7 = arith.divf %5, %6 : vector<512x64xf32>
    %8 = arith.mulf %2, %7 : vector<512x64xf32>
    %c0_4 = arith.constant 0 : index
    %c0_5 = arith.constant 0 : index
    %9 = vector.load %arg2[%c0_4, %c0_5] : memref<8x512xf32, #tpu.memory_space<vmem>>, vector<8x512xf32>
    %cst_6 = arith.constant dense<0.000000e+00> : vector<8x64xf32>
    %10 = tpu.matmul %9, %8, %cst_6 {dimension_numbers = #tpu.dot_dimension_numbers<[1], [0], [0], [1], [0, 0, 1, 1], [], []>} : vector<8x512xf32>, vector<512x64xf32>, vector<8x64xf32> -> vector<8x64xf32>
    %c0_7 = arith.constant 0 : index
    %c0_8 = arith.constant 0 : index
    %11 = vector.load %arg3[%c0_7, %c0_8] : memref<64x128xf32, #tpu.memory_space<vmem>>, vector<64x128xf32>
    %cst_9 = arith.constant dense<0.000000e+00> : vector<8x128xf32>
    %12 = tpu.matmul %10, %11, %cst_9 {dimension_numbers = #tpu.dot_dimension_numbers<[1], [0], [0], [1], [0, 0, 1, 1], [], []>} : vector<8x64xf32>, vector<64x128xf32>, vector<8x128xf32> -> vector<8x128xf32>
    %c0_10 = arith.constant 0 : index
    %c0_11 = arith.constant 0 : index
    %13 = vector.load %arg4[%c0_10, %c0_11] : memref<1x128xf32, #tpu.memory_space<vmem>>, vector<1x128xf32>
    %14 = vector.broadcast %13 : vector<1x128xf32> to vector<8x128xf32>
    %15 = arith.addf %12, %14 : vector<8x128xf32>
    %16 = arith.mulf %15, %15 : vector<8x128xf32>
    %cst_12 = arith.constant dense<0.000000e+00> : vector<8xf32>
    %17 = vector.multi_reduction <add>, %16, %cst_12 [1] : vector<8x128xf32> to vector<8xf32>
    %18 = vector.shape_cast %17 : vector<8xf32> to vector<8x1xf32>
    %cst_13 = arith.constant 1.000000e-24 : f32
    %19 = vector.broadcast %cst_13 : f32 to vector<8x1xf32>
    %20 = arith.maximumf %18, %19 : vector<8x1xf32>
    %21 = math.rsqrt %20 : vector<8x1xf32>
    %22 = vector.broadcast %21 : vector<8x1xf32> to vector<8x128xf32>
    %23 = arith.mulf %15, %22 : vector<8x128xf32>
    %c0_14 = arith.constant 0 : index
    %c0_15 = arith.constant 0 : index
    %24 = vector.load %arg5[%c0_14, %c0_15] : memref<8x128xf32, #tpu.memory_space<vmem>>, vector<8x128xf32>
    tpu.vector_store %arg5[%c0_14, %c0_15], %23 {strides = array<i32>} : memref<8x128xf32, #tpu.memory_space<vmem>>, vector<8x128xf32>,
    return
  }
}

</mosaic_0001>

<llo_original>
// kernel: capsule_verification_forward.1
$region0: #{capsule_verification_forward.1}
  #allocation0 [shape = 'u32[]', space=smem, size = 0x4, offset = 0x4, fixed_abs, tag = 'smem constant byte address 0x4 - core index']
  #allocation1 [shape = 'u32[144,128]{1,0:T(1,128)}', space=vmem, size = 0x12000, scoped, tag = 'internal scratch']
  %s0 = inlined_call_operand.vmem [shape: bf16[512,36], index: 0, kind: input, shape index: {}]
  %s1 = inlined_call_operand.vmem [shape: bf16[36,64], index: 1, kind: input, shape index: {}]
  %s2 = inlined_call_operand.vmem [shape: f32[8,512], index: 2, kind: input, shape index: {}]
  %s3 = inlined_call_operand.vmem [shape: f32[64,128], index: 3, kind: input, shape index: {}]
  %s4 = inlined_call_operand.vmem [shape: f32[1,128], index: 4, kind: input, shape index: {}]
  %s5 = inlined_call_operand.vmem [shape: f32[8,128], index: 5, kind: output, shape index: {}]
  %s6 = sld [smem:[#allocation0]]
  $region30: #{capsule_verification_forward.1} parent=0
    _
  %s8 = ssub.s32 1, %s6
  %s9 = scalar_select 0, %s8, %s6
  // Predicated region
  $region2: #{capsule_verification_forward.1} parent=0 // pred_check
    _
  $region3: #{capsule_verification_forward.1} parent=0 // pred_check_branch
    %11 = sbr.rel (0) target = $region5
  $region4: #{capsule_verification_forward.1} parent=0 // pred_region
    _
  $region5: #{capsule_verification_forward.1} parent=0 // pred_fallthru
    _
  // Predicated region
  $region6: #{capsule_verification_forward.1} parent=0 // pred_check
    _
  $region7: #{capsule_verification_forward.1} parent=0 // pred_check_branch
    %13 = sbr.rel (0) target = $region9
  $region8: #{capsule_verification_forward.1} parent=0 // pred_region
    _
  $region9: #{capsule_verification_forward.1} parent=0 // pred_fallthru
    _
  // Predicated region
  $region10: #{capsule_verification_forward.1} parent=0 // pred_check
    _
  $region11: #{capsule_verification_forward.1} parent=0 // pred_check_branch
    %15 = sbr.rel (0) target = $region13
  $region12: #{capsule_verification_forward.1} parent=0 // pred_region
    _
  $region13: #{capsule_verification_forward.1} parent=0 // pred_fallthru
    _
  // Predicated region
  $region14: #{capsule_verification_forward.1} parent=0 // pred_check
    _
  $region15: #{capsule_verification_forward.1} parent=0 // pred_check_branch
    %17 = sbr.rel (0) target = $region17
  $region16: #{capsule_verification_forward.1} parent=0 // pred_region
    _
  $region17: #{capsule_verification_forward.1} parent=0 // pred_fallthru
    _
  // Predicated region
  $region18: #{capsule_verification_forward.1} parent=0 // pred_check
    _
  $region19: #{capsule_verification_forward.1} parent=0 // pred_check_branch
    %19 = sbr.rel (0) target = $region21
  $region20: #{capsule_verification_forward.1} parent=0 // pred_region
    _
  $region21: #{capsule_verification_forward.1} parent=0 // pred_fallthru
    _
  %v21 = vld [vmem:[%s0] sm:$0xf]
  %v22 = vld [vmem:[%s0 + $0x4] sm:$0xf]
  %v23 = vld [vmem:[%s0 + $0x8] sm:$0xf]
  %v24 = vld [vmem:[%s0 + $0xc] sm:$0xf]
  %v25 = vld [vmem:[%s0 + $0x10] sm:$0xf]
  %v26 = vld [vmem:[%s0 + $0x14] sm:$0xf]
  %v27 = vld [vmem:[%s0 + $0x18] sm:$0xf]
  %v28 = vld [vmem:[%s0 + $0x1c] sm:$0xf]
  %v29 = vld [vmem:[%s0 + $0x20] sm:$0xf]
  %v30 = vld [vmem:[%s0 + $0x24] sm:$0xf]
  %v31 = vld [vmem:[%s0 + $0x28] sm:$0xf]
  %v32 = vld [vmem:[%s0 + $0x2c] sm:$0xf]
  %v33 = vld [vmem:[%s0 + $0x30] sm:$0xf]
  %v34 = vld [vmem:[%s0 + $0x34] sm:$0xf]
  %v35 = vld [vmem:[%s0 + $0x38] sm:$0xf]
  %v36 = vld [vmem:[%s0 + $0x3c] sm:$0xf]
  %v37 = vld [vmem:[%s0 + $0x40] sm:$0xf]
  %v38 = vld [vmem:[%s0 + $0x44] sm:$0xf]
  %v39 = vld [vmem:[%s0 + $0x48] sm:$0xf]
  %v40 = vld [vmem:[%s0 + $0x4c] sm:$0xf]
  %v41 = vld [vmem:[%s0 + $0x50] sm:$0xf]
  %v42 = vld [vmem:[%s0 + $0x54] sm:$0xf]
  %v43 = vld [vmem:[%s0 + $0x58] sm:$0xf]
  %v44 = vld [vmem:[%s0 + $0x5c] sm:$0xf]
  %v45 = vld [vmem:[%s0 + $0x60] sm:$0xf]
  %v46 = vld [vmem:[%s0 + $0x64] sm:$0xf]
  %v47 = vld [vmem:[%s0 + $0x68] sm:$0xf]
  %v48 = vld [vmem:[%s0 + $0x6c] sm:$0xf]
  %v49 = vld [vmem:[%s0 + $0x70] sm:$0xf]
  %v50 = vld [vmem:[%s0 + $0x74] sm:$0xf]
  %v51 = vld [vmem:[%s0 + $0x78] sm:$0xf]
  %v52 = vld [vmem:[%s0 + $0x7c] sm:$0xf]
  %v53 = vld [vmem:[%s0 + $0x80] sm:$0xf]
  %v54 = vld [vmem:[%s0 + $0x84] sm:$0xf]
  %v55 = vld [vmem:[%s0 + $0x88] sm:$0xf]
  %v56 = vld [vmem:[%s0 + $0x8c] sm:$0xf]
  %v57 = vld [vmem:[%s0 + $0x90] sm:$0xf]
  %v58 = vld [vmem:[%s0 + $0x94] sm:$0xf]
  %v59 = vld [vmem:[%s0 + $0x98] sm:$0xf]
  %v60 = vld [vmem:[%s0 + $0x9c] sm:$0xf]
  %v61 = vld [vmem:[%s0 + $0xa0] sm:$0xf]
  %v62 = vld [vmem:[%s0 + $0xa4] sm:$0xf]
  %v63 = vld [vmem:[%s0 + $0xa8] sm:$0xf]
  %v64 = vld [vmem:[%s0 + $0xac] sm:$0xf]
  %v65 = vld [vmem:[%s0 + $0xb0] sm:$0xf]
  %v66 = vld [vmem:[%s0 + $0xb4] sm:$0xf]
  %v67 = vld [vmem:[%s0 + $0xb8] sm:$0xf]
  %v68 = vld [vmem:[%s0 + $0xbc] sm:$0xf]
  %v69 = vld [vmem:[%s0 + $0xc0] sm:$0xf]
  %v70 = vld [vmem:[%s0 + $0xc4] sm:$0xf]
  %v71 = vld [vmem:[%s0 + $0xc8] sm:$0xf]
  %v72 = vld [vmem:[%s0 + $0xcc] sm:$0xf]
  %v73 = vld [vmem:[%s0 + $0xd0] sm:$0xf]
  %v74 = vld [vmem:[%s0 + $0xd4] sm:$0xf]
  %v75 = vld [vmem:[%s0 + $0xd8] sm:$0xf]
  %v76 = vld [vmem:[%s0 + $0xdc] sm:$0xf]
  %v77 = vld [vmem:[%s0 + $0xe0] sm:$0xf]
  %v78 = vld [vmem:[%s0 + $0xe4] sm:$0xf]
  %v79 = vld [vmem:[%s0 + $0xe8] sm:$0xf]
  %v80 = vld [vmem:[%s0 + $0xec] sm:$0xf]
  %v81 = vld [vmem:[%s0 + $0xf0] sm:$0xf]
  %v82 = vld [vmem:[%s0 + $0xf4] sm:$0xf]
  %v83 = vld [vmem:[%s0 + $0xf8] sm:$0xf]
  %v84 = vld [vmem:[%s0 + $0xfc] sm:$0xf]
  %v85 = vld [vmem:[%s1] sm:$0xf]
  %v86 = vld [vmem:[%s1 + $0x4] sm:$0xf]
  %v87 = vld [vmem:[%s1 + $0x8] sm:$0xf]
  %v88 = vld [vmem:[%s1 + $0xc] sm:$0xf]
  %v89 = vld [vmem:[%s1 + $0x10] sm:$0x3]
  %v154 = vunpack.c.l.b16 %v21
  %v155 = vunpack.c.l.b16 %v22
  %v156 = vunpack.c.l.b16 %v23
  %v157 = vunpack.c.l.b16 %v24
  %v158 = vunpack.c.l.b16 %v25
  %v159 = vunpack.c.l.b16 %v26
  %v160 = vunpack.c.l.b16 %v27
  %v161 = vunpack.c.l.b16 %v28
  %v162 = vunpack.c.l.b16 %v29
  %v163 = vunpack.c.l.b16 %v30
  %v164 = vunpack.c.l.b16 %v31
  %v165 = vunpack.c.l.b16 %v32
  %v166 = vunpack.c.l.b16 %v33
  %v167 = vunpack.c.l.b16 %v34
  %v168 = vunpack.c.l.b16 %v35
  %v169 = vunpack.c.l.b16 %v36
  %v170 = vunpack.c.l.b16 %v37
  %v171 = vunpack.c.l.b16 %v38
  %v172 = vunpack.c.l.b16 %v39
  %v173 = vunpack.c.l.b16 %v40
  %v174 = vunpack.c.l.b16 %v41
  %v175 = vunpack.c.l.b16 %v42
  %v176 = vunpack.c.l.b16 %v43
  %v177 = vunpack.c.l.b16 %v44
  %v178 = vunpack.c.l.b16 %v45
  %v179 = vunpack.c.l.b16 %v46
  %v180 = vunpack.c.l.b16 %v47
  %v181 = vunpack.c.l.b16 %v48
  %v182 = vunpack.c.l.b16 %v49
  %v183 = vunpack.c.l.b16 %v50
  %v184 = vunpack.c.l.b16 %v51
  %v185 = vunpack.c.l.b16 %v52
  %v186 = vunpack.c.l.b16 %v53
  %v187 = vunpack.c.l.b16 %v54
  %v188 = vunpack.c.l.b16 %v55
  %v189 = vunpack.c.l.b16 %v56
  %v190 = vunpack.c.l.b16 %v57
  %v191 = vunpack.c.l.b16 %v58
  %v192 = vunpack.c.l.b16 %v59
  %v193 = vunpack.c.l.b16 %v60
  %v194 = vunpack.c.l.b16 %v61
  %v195 = vunpack.c.l.b16 %v62
  %v196 = vunpack.c.l.b16 %v63
  %v197 = vunpack.c.l.b16 %v64
  %v198 = vunpack.c.l.b16 %v65
  %v199 = vunpack.c.l.b16 %v66
  %v200 = vunpack.c.l.b16 %v67
  %v201 = vunpack.c.l.b16 %v68
  %v202 = vunpack.c.l.b16 %v69
  %v203 = vunpack.c.l.b16 %v70
  %v204 = vunpack.c.l.b16 %v71
  %v205 = vunpack.c.l.b16 %v72
  %v206 = vunpack.c.l.b16 %v73
  %v207 = vunpack.c.l.b16 %v74
  %v208 = vunpack.c.l.b16 %v75
  %v209 = vunpack.c.l.b16 %v76
  %v210 = vunpack.c.l.b16 %v77
  %v211 = vunpack.c.l.b16 %v78
  %v212 = vunpack.c.l.b16 %v79
  %v213 = vunpack.c.l.b16 %v80
  %v214 = vunpack.c.l.b16 %v81
  %v215 = vunpack.c.l.b16 %v82
  %v216 = vunpack.c.l.b16 %v83
  %v217 = vunpack.c.l.b16 %v84
  %v218 = vpack.c.b16 %v155, %v154
  %v219 = vpack.c.b16 %v157, %v156
  %v220 = vpack.c.b16 %v159, %v158
  %v221 = vpack.c.b16 %v161, %v160
  %v222 = vpack.c.b16 %v163, %v162
  %v223 = vpack.c.b16 %v165, %v164
  %v224 = vpack.c.b16 %v167, %v166
  %v225 = vpack.c.b16 %v169, %v168
  %v226 = vpack.c.b16 %v171, %v170
  %v227 = vpack.c.b16 %v173, %v172
  %v228 = vpack.c.b16 %v175, %v174
  %v229 = vpack.c.b16 %v177, %v176
  %v230 = vpack.c.b16 %v179, %v178
  %v231 = vpack.c.b16 %v181, %v180
  %v232 = vpack.c.b16 %v183, %v182
  %v233 = vpack.c.b16 %v185, %v184
  %v234 = vpack.c.b16 %v187, %v186
  %v235 = vpack.c.b16 %v189, %v188
  %v236 = vpack.c.b16 %v191, %v190
  %v237 = vpack.c.b16 %v193, %v192
  %v238 = vpack.c.b16 %v195, %v194
  %v239 = vpack.c.b16 %v197, %v196
  %v240 = vpack.c.b16 %v199, %v198
  %v241 = vpack.c.b16 %v201, %v200
  %v242 = vpack.c.b16 %v203, %v202
  %v243 = vpack.c.b16 %v205, %v204
  %v244 = vpack.c.b16 %v207, %v206
  %v245 = vpack.c.b16 %v209, %v208
  %v246 = vpack.c.b16 %v211, %v210
  %v247 = vpack.c.b16 %v213, %v212
  %v248 = vpack.c.b16 %v215, %v214
  %v249 = vpack.c.b16 %v217, %v216
  %v255 = vunpack.c.l.b16 %v85
  %v256 = vunpack.c.l.b16 %v86
  %v257 = vunpack.c.l.b16 %v87
  %v258 = vunpack.c.l.b16 %v88
  %v259 = vunpack.c.l.b16 %v89
  %v260 = vpack.c.b16 %v256, %v255
  %v261 = vpack.c.b16 %v258, %v257
  %v262 = vpack.c.b16 %v259, %v259
  %vm265 = vcmask 293888
  %v267 = vsel %vm265, %v218, 0
  %v270 = vsel %vm265, %v219, 0
  %v273 = vsel %vm265, %v220, 0
  %v276 = vsel %vm265, %v221, 0
  %v279 = vsel %vm265, %v222, 0
  %v282 = vsel %vm265, %v223, 0
  %v285 = vsel %vm265, %v224, 0
  %v288 = vsel %vm265, %v225, 0
  %v291 = vsel %vm265, %v226, 0
  %v294 = vsel %vm265, %v227, 0
  %v297 = vsel %vm265, %v228, 0
  %v300 = vsel %vm265, %v229, 0
  %v303 = vsel %vm265, %v230, 0
  %v306 = vsel %vm265, %v231, 0
  %v309 = vsel %vm265, %v232, 0
  %v312 = vsel %vm265, %v233, 0
  %v315 = vsel %vm265, %v234, 0
  %v318 = vsel %vm265, %v235, 0
  %v321 = vsel %vm265, %v236, 0
  %v324 = vsel %vm265, %v237, 0
  %v327 = vsel %vm265, %v238, 0
  %v330 = vsel %vm265, %v239, 0
  %v333 = vsel %vm265, %v240, 0
  %v336 = vsel %vm265, %v241, 0
  %v339 = vsel %vm265, %v242, 0
  %v342 = vsel %vm265, %v243, 0
  %v345 = vsel %vm265, %v244, 0
  %v348 = vsel %vm265, %v245, 0
  %v351 = vsel %vm265, %v246, 0
  %v354 = vsel %vm265, %v247, 0
  %v357 = vsel %vm265, %v248, 0
  %v360 = vsel %vm265, %v249, 0
  %vm362 = vcmask 1041408
  %v364 = vsel %vm362, %v262, 0
  %366 = vmatprep.subr.bf16.mxu0 0
  %367 = vmatpush1.bf16.msra.mxu0 %v260
  %368 = vmatprep.subr.bf16.mxu0 0
  %369 = vmatpush1.bf16.msra.mxu0 %v261
  %370 = vmatprep.subr.bf16.mxu0 0
  %371 = vmatpush1.bf16.msra.mxu0 %v364
  %372 = vmatprep.subr.bf16.mxu0 0
  %373 = vmatpush1.bf16.msra.mxu0 0
  %374 = vmatprep.subr.bf16.mxu0 0
  %375 = vmatpush1.bf16.msra.mxu0 0
  %376 = vmatprep.subr.bf16.mxu0 0
  %377 = vmatpush1.bf16.msra.mxu0 0
  %378 = vmatprep.subr.bf16.mxu0 0
  %379 = vmatpush1.bf16.msra.mxu0 0
  %380 = vmatprep.subr.bf16.mxu0 0
  %381 = vmatpush1.bf16.msra.mxu0 0
  %382 = vmatprep.subr.bf16.mxu0 0
  %383 = vmatpush1.bf16.msra.mxu0 0
  %384 = vmatprep.subr.bf16.mxu0 0
  %385 = vmatpush1.bf16.msra.mxu0 0
  %386 = vmatprep.subr.bf16.mxu0 0
  %387 = vmatpush1.bf16.msra.mxu0 0
  %388 = vmatprep.subr.bf16.mxu0 0
  %389 = vmatpush1.bf16.msra.mxu0 0
  %390 = vmatprep.subr.bf16.mxu0 0
  %391 = vmatpush1.bf16.msra.mxu0 0
  %392 = vmatprep.subr.bf16.mxu0 0
  %393 = vmatpush1.bf16.msra.mxu0 0
  %394 = vmatprep.subr.bf16.mxu0 0
  %395 = vmatpush1.bf16.msra.mxu0 0
  %396 = vmatprep.subr.bf16.mxu0 0
  %397 = vmatpush1.bf16.msra.mxu0 0
  %398 = vmatprep.mubr.bf16.mxu0 0
  %399 = vmatmul.mubr.bf16.gmra.mrb[0].mxu0 %v267
  %v400 = vpop.f32.mrb[0].mxu0
  %v401 = vadd.f32 0.0, %v400
  %v402 = vpop.f32.mrb[0].mxu0
  %v403 = vpop.f32.mrb[0].mxu0
  %v404 = vadd.f32 0.0, %v403
  %v405 = vpop.f32.mrb[0].mxu0
  %406 = vmatprep.mubr.bf16.mxu0 0
  %407 = vmatmul.mubr.bf16.gmra.mrb[0].mxu0 %v270
  %v408 = vpop.f32.mrb[0].mxu0
  %v409 = vadd.f32 0.0, %v408
  %v410 = vpop.f32.mrb[0].mxu0
  %v411 = vpop.f32.mrb[0].mxu0
  %v412 = vadd.f32 0.0, %v411
  %v413 = vpop.f32.mrb[0].mxu0
  %414 = vmatprep.mubr.bf16.mxu0 0
  %415 = vmatmul.mubr.bf16.gmra.mrb[0].mxu0 %v273
  %v416 = vpop.f32.mrb[0].mxu0
  %v417 = vadd.f32 0.0, %v416
  %v418 = vpop.f32.mrb[0].mxu0
  %v419 = vpop.f32.mrb[0].mxu0
  %v420 = vadd.f32 0.0, %v419
  %v421 = vpop.f32.mrb[0].mxu0
  %422 = vmatprep.mubr.bf16.mxu0 0
  %423 = vmatmul.mubr.bf16.gmra.mrb[0].mxu0 %v276
  %v424 = vpop.f32.mrb[0].mxu0
  %v425 = vadd.f32 0.0, %v424
  %v426 = vpop.f32.mrb[0].mxu0
  %v427 = vpop.f32.mrb[0].mxu0
  %v428 = vadd.f32 0.0, %v427
  %v429 = vpop.f32.mrb[0].mxu0
  %430 = vmatprep.mubr.bf16.mxu0 0
  %431 = vmatmul.mubr.bf16.gmra.mrb[0].mxu0 %v279
  %v432 = vpop.f32.mrb[0].mxu0
  %v433 = vadd.f32 0.0, %v432
  %v434 = vpop.f32.mrb[0].mxu0
  %v435 = vpop.f32.mrb[0].mxu0
  %v436 = vadd.f32 0.0, %v435
  %v437 = vpop.f32.mrb[0].mxu0
  %438 = vmatprep.mubr.bf16.mxu0 0
  %439 = vmatmul.mubr.bf16.gmra.mrb[0].mxu0 %v282
  %v440 = vpop.f32.mrb[0].mxu0
  %v441 = vadd.f32 0.0, %v440
  %v442 = vpop.f32.mrb[0].mxu0
  %v443 = vpop.f32.mrb[0].mxu0
  %v444 = vadd.f32 0.0, %v443
  %v445 = vpop.f32.mrb[0].mxu0
  %446 = vmatprep.mubr.bf16.mxu0 0
  %447 = vmatmul.mubr.bf16.gmra.mrb[0].mxu0 %v285
  %v448 = vpop.f32.mrb[0].mxu0
  %v449 = vadd.f32 0.0, %v448
  %v450 = vpop.f32.mrb[0].mxu0
  %v451 = vpop.f32.mrb[0].mxu0
  %v452 = vadd.f32 0.0, %v451
  %v453 = vpop.f32.mrb[0].mxu0
  %454 = vmatprep.mubr.bf16.mxu0 0
  %455 = vmatmul.mubr.bf16.gmra.mrb[0].mxu0 %v288
  %v456 = vpop.f32.mrb[0].mxu0
  %v457 = vadd.f32 0.0, %v456
  %v458 = vpop.f32.mrb[0].mxu0
  %v459 = vpop.f32.mrb[0].mxu0
  %v460 = vadd.f32 0.0, %v459
  %v461 = vpop.f32.mrb[0].mxu0
  %462 = vmatprep.mubr.bf16.mxu0 0
  %463 = vmatmul.mubr.bf16.gmra.mrb[0].mxu0 %v291
  %v464 = vpop.f32.mrb[0].mxu0
  %v465 = vadd.f32 0.0, %v464
  %v466 = vpop.f32.mrb[0].mxu0
  %v467 = vpop.f32.mrb[0].mxu0
  %v468 = vadd.f32 0.0, %v467
  %v469 = vpop.f32.mrb[0].mxu0
  %470 = vmatprep.mubr.bf16.mxu0 0
  %471 = vmatmul.mubr.bf16.gmra.mrb[0].mxu0 %v294
  %v472 = vpop.f32.mrb[0].mxu0
  %v473 = vadd.f32 0.0, %v472
  %v474 = vpop.f32.mrb[0].mxu0
  %v475 = vpop.f32.mrb[0].mxu0
  %v476 = vadd.f32 0.0, %v475
  %v477 = vpop.f32.mrb[0].mxu0
  %478 = vmatprep.mubr.bf16.mxu0 0
  %479 = vmatmul.mubr.bf16.gmra.mrb[0].mxu0 %v297
  %v480 = vpop.f32.mrb[0].mxu0
  %v481 = vadd.f32 0.0, %v480
  %v482 = vpop.f32.mrb[0].mxu0
  %v483 = vpop.f32.mrb[0].mxu0
  %v484 = vadd.f32 0.0, %v483
  %v485 = vpop.f32.mrb[0].mxu0
  %486 = vmatprep.mubr.bf16.mxu0 0
  %487 = vmatmul.mubr.bf16.gmra.mrb[0].mxu0 %v300
  %v488 = vpop.f32.mrb[0].mxu0
  %v489 = vadd.f32 0.0, %v488
  %v490 = vpop.f32.mrb[0].mxu0
  %v491 = vpop.f32.mrb[0].mxu0
  %v492 = vadd.f32 0.0, %v491
  %v493 = vpop.f32.mrb[0].mxu0
  %494 = vmatprep.mubr.bf16.mxu0 0
  %495 = vmatmul.mubr.bf16.gmra.mrb[0].mxu0 %v303
  %v496 = vpop.f32.mrb[0].mxu0
  %v497 = vadd.f32 0.0, %v496
  %v498 = vpop.f32.mrb[0].mxu0
  %v499 = vpop.f32.mrb[0].mxu0
  %v500 = vadd.f32 0.0, %v499
  %v501 = vpop.f32.mrb[0].mxu0
  %502 = vmatprep.mubr.bf16.mxu0 0
  %503 = vmatmul.mubr.bf16.gmra.mrb[0].mxu0 %v306
  %v504 = vpop.f32.mrb[0].mxu0
  %v505 = vadd.f32 0.0, %v504
  %v506 = vpop.f32.mrb[0].mxu0
  %v507 = vpop.f32.mrb[0].mxu0
  %v508 = vadd.f32 0.0, %v507
  %v509 = vpop.f32.mrb[0].mxu0
  %510 = vmatprep.mubr.bf16.mxu0 0
  %511 = vmatmul.mubr.bf16.gmra.mrb[0].mxu0 %v309
  %v512 = vpop.f32.mrb[0].mxu0
  %v513 = vadd.f32 0.0, %v512
  %v514 = vpop.f32.mrb[0].mxu0
  %v515 = vpop.f32.mrb[0].mxu0
  %v516 = vadd.f32 0.0, %v515
  %v517 = vpop.f32.mrb[0].mxu0
  %518 = vmatprep.mubr.bf16.mxu0 0
  %519 = vmatmul.mubr.bf16.gmra.mrb[0].mxu0 %v312
  %v520 = vpop.f32.mrb[0].mxu0
  %v521 = vadd.f32 0.0, %v520
  %v522 = vpop.f32.mrb[0].mxu0
  %v523 = vpop.f32.mrb[0].mxu0
  %v524 = vadd.f32 0.0, %v523
  %v525 = vpop.f32.mrb[0].mxu0
  %526 = vmatprep.mubr.bf16.mxu0 0
  %527 = vmatmul.mubr.bf16.gmra.mrb[0].mxu0 %v315
  %v528 = vpop.f32.mrb[0].mxu0
  %v529 = vadd.f32 0.0, %v528
  %v530 = vpop.f32.mrb[0].mxu0
  %v531 = vpop.f32.mrb[0].mxu0
  %v532 = vadd.f32 0.0, %v531
  %v533 = vpop.f32.mrb[0].mxu0
  %534 = vmatprep.mubr.bf16.mxu0 0
  %535 = vmatmul.mubr.bf16.gmra.mrb[0].mxu0 %v318
  %v536 = vpop.f32.mrb[0].mxu0
  %v537 = vadd.f32 0.0, %v536
  %v538 = vpop.f32.mrb[0].mxu0
  %v539 = vpop.f32.mrb[0].mxu0
  %v540 = vadd.f32 0.0, %v539
  %v541 = vpop.f32.mrb[0].mxu0
  %542 = vmatprep.mubr.bf16.mxu0 0
  %543 = vmatmul.mubr.bf16.gmra.mrb[0].mxu0 %v321
  %v544 = vpop.f32.mrb[0].mxu0
  %v545 = vadd.f32 0.0, %v544
  %v546 = vpop.f32.mrb[0].mxu0
  %v547 = vpop.f32.mrb[0].mxu0
  %v548 = vadd.f32 0.0, %v547
  %v549 = vpop.f32.mrb[0].mxu0
  %550 = vmatprep.mubr.bf16.mxu0 0
  %551 = vmatmul.mubr.bf16.gmra.mrb[0].mxu0 %v324
  %v552 = vpop.f32.mrb[0].mxu0
  %v553 = vadd.f32 0.0, %v552
  %v554 = vpop.f32.mrb[0].mxu0
  %v555 = vpop.f32.mrb[0].mxu0
  %v556 = vadd.f32 0.0, %v555
  %v557 = vpop.f32.mrb[0].mxu0
  %558 = vmatprep.mubr.bf16.mxu0 0
  %559 = vmatmul.mubr.bf16.gmra.mrb[0].mxu0 %v327
  %v560 = vpop.f32.mrb[0].mxu0
  %v561 = vadd.f32 0.0, %v560
  %v562 = vpop.f32.mrb[0].mxu0
  %v563 = vpop.f32.mrb[0].mxu0
  %v564 = vadd.f32 0.0, %v563
  %v565 = vpop.f32.mrb[0].mxu0
  %566 = vmatprep.mubr.bf16.mxu0 0
  %567 = vmatmul.mubr.bf16.gmra.mrb[0].mxu0 %v330
  %v568 = vpop.f32.mrb[0].mxu0
  %v569 = vadd.f32 0.0, %v568
  %v570 = vpop.f32.mrb[0].mxu0
  %v571 = vpop.f32.mrb[0].mxu0
  %v572 = vadd.f32 0.0, %v571
  %v573 = vpop.f32.mrb[0].mxu0
  %574 = vmatprep.mubr.bf16.mxu0 0
  %575 = vmatmul.mubr.bf16.gmra.mrb[0].mxu0 %v333
  %v576 = vpop.f32.mrb[0].mxu0
  %v577 = vadd.f32 0.0, %v576
  %v578 = vpop.f32.mrb[0].mxu0
  %v579 = vpop.f32.mrb[0].mxu0
  %v580 = vadd.f32 0.0, %v579
  %v581 = vpop.f32.mrb[0].mxu0
  %582 = vmatprep.mubr.bf16.mxu0 0
  %583 = vmatmul.mubr.bf16.gmra.mrb[0].mxu0 %v336
  %v584 = vpop.f32.mrb[0].mxu0
  %v585 = vadd.f32 0.0, %v584
  %v586 = vpop.f32.mrb[0].mxu0
  %v587 = vpop.f32.mrb[0].mxu0
  %v588 = vadd.f32 0.0, %v587
  %v589 = vpop.f32.mrb[0].mxu0
  %590 = vmatprep.mubr.bf16.mxu0 0
  %591 = vmatmul.mubr.bf16.gmra.mrb[0].mxu0 %v339
  %v592 = vpop.f32.mrb[0].mxu0
  %v593 = vadd.f32 0.0, %v592
  %v594 = vpop.f32.mrb[0].mxu0
  %v595 = vpop.f32.mrb[0].mxu0
  %v596 = vadd.f32 0.0, %v595
  %v597 = vpop.f32.mrb[0].mxu0
  %598 = vmatprep.mubr.bf16.mxu0 0
  %599 = vmatmul.mubr.bf16.gmra.mrb[0].mxu0 %v342
  %v600 = vpop.f32.mrb[0].mxu0
  %v601 = vadd.f32 0.0, %v600
  %v602 = vpop.f32.mrb[0].mxu0
  %v603 = vpop.f32.mrb[0].mxu0
  %v604 = vadd.f32 0.0, %v603
  %v605 = vpop.f32.mrb[0].mxu0
  %606 = vmatprep.mubr.bf16.mxu0 0
  %607 = vmatmul.mubr.bf16.gmra.mrb[0].mxu0 %v345
  %v608 = vpop.f32.mrb[0].mxu0
  %v609 = vadd.f32 0.0, %v608
  %v610 = vpop.f32.mrb[0].mxu0
  %v611 = vpop.f32.mrb[0].mxu0
  %v612 = vadd.f32 0.0, %v611
  %v613 = vpop.f32.mrb[0].mxu0
  %614 = vmatprep.mubr.bf16.mxu0 0
  %615 = vmatmul.mubr.bf16.gmra.mrb[0].mxu0 %v348
  %v616 = vpop.f32.mrb[0].mxu0
  %v617 = vadd.f32 0.0, %v616
  %v618 = vpop.f32.mrb[0].mxu0
  %v619 = vpop.f32.mrb[0].mxu0
  %v620 = vadd.f32 0.0, %v619
  %v621 = vpop.f32.mrb[0].mxu0
  %622 = vmatprep.mubr.bf16.mxu0 0
  %623 = vmatmul.mubr.bf16.gmra.mrb[0].mxu0 %v351
  %v624 = vpop.f32.mrb[0].mxu0
  %v625 = vadd.f32 0.0, %v624
  %v626 = vpop.f32.mrb[0].mxu0
  %v627 = vpop.f32.mrb[0].mxu0
  %v628 = vadd.f32 0.0, %v627
  %v629 = vpop.f32.mrb[0].mxu0
  %630 = vmatprep.mubr.bf16.mxu0 0
  %631 = vmatmul.mubr.bf16.gmra.mrb[0].mxu0 %v354
  %v632 = vpop.f32.mrb[0].mxu0
  %v633 = vadd.f32 0.0, %v632
  %v634 = vpop.f32.mrb[0].mxu0
  %v635 = vpop.f32.mrb[0].mxu0
  %v636 = vadd.f32 0.0, %v635
  %v637 = vpop.f32.mrb[0].mxu0
  %638 = vmatprep.mubr.bf16.mxu0 0
  %639 = vmatmul.mubr.bf16.gmra.mrb[0].mxu0 %v357
  %v640 = vpop.f32.mrb[0].mxu0
  %v641 = vadd.f32 0.0, %v640
  %v642 = vpop.f32.mrb[0].mxu0
  %v643 = vpop.f32.mrb[0].mxu0
  %v644 = vadd.f32 0.0, %v643
  %v645 = vpop.f32.mrb[0].mxu0
  %646 = vmatprep.mubr.bf16.mxu0 0
  %647 = vmatmul.mubr.bf16.gmra.mrb[0].mxu0 %v360
  %v648 = vpop.f32.mrb[0].mxu0
  %v649 = vadd.f32 0.0, %v648
  %v650 = vpop.f32.mrb[0].mxu0
  %v651 = vpop.f32.mrb[0].mxu0
  %v652 = vadd.f32 0.0, %v651
  %v653 = vpop.f32.mrb[0].mxu0
  %654 = vdwg.mxu0
  %v655 = vxor.u32 %v401, 2147483648
  %v656 = vxor.u32 %v404, 2147483648
  %v657 = vxor.u32 %v409, 2147483648
  %v658 = vxor.u32 %v412, 2147483648
  %v659 = vxor.u32 %v417, 2147483648
  %v660 = vxor.u32 %v420, 2147483648
  %v661 = vxor.u32 %v425, 2147483648
  %v662 = vxor.u32 %v428, 2147483648
  %v663 = vxor.u32 %v433, 2147483648
  %v664 = vxor.u32 %v436, 2147483648
  %v665 = vxor.u32 %v441, 2147483648
  %v666 = vxor.u32 %v444, 2147483648
  %v667 = vxor.u32 %v449, 2147483648
  %v668 = vxor.u32 %v452, 2147483648
  %v669 = vxor.u32 %v457, 2147483648
  %v670 = vxor.u32 %v460, 2147483648
  %v671 = vxor.u32 %v465, 2147483648
  %v672 = vxor.u32 %v468, 2147483648
  %v673 = vxor.u32 %v473, 2147483648
  %v674 = vxor.u32 %v476, 2147483648
  %v675 = vxor.u32 %v481, 2147483648
  %v676 = vxor.u32 %v484, 2147483648
  %v677 = vxor.u32 %v489, 2147483648
  %v678 = vxor.u32 %v492, 2147483648
  %v679 = vxor.u32 %v497, 2147483648
  %v680 = vxor.u32 %v500, 2147483648
  %v681 = vxor.u32 %v505, 2147483648
  %v682 = vxor.u32 %v508, 2147483648
  %v683 = vxor.u32 %v513, 2147483648
  %v684 = vxor.u32 %v516, 2147483648
  %v685 = vxor.u32 %v521, 2147483648
  %v686 = vxor.u32 %v524, 2147483648
  %v687 = vxor.u32 %v529, 2147483648
  %v688 = vxor.u32 %v532, 2147483648
  %v689 = vxor.u32 %v537, 2147483648
  %v690 = vxor.u32 %v540, 2147483648
  %v691 = vxor.u32 %v545, 2147483648
  %v692 = vxor.u32 %v548, 2147483648
  %v693 = vxor.u32 %v553, 2147483648
  %v694 = vxor.u32 %v556, 2147483648
  %v695 = vxor.u32 %v561, 2147483648
  %v696 = vxor.u32 %v564, 2147483648
  %v697 = vxor.u32 %v569, 2147483648
  %v698 = vxor.u32 %v572, 2147483648
  %v699 = vxor.u32 %v577, 2147483648
  %v700 = vxor.u32 %v580, 2147483648
  %v701 = vxor.u32 %v585, 2147483648
  %v702 = vxor.u32 %v588, 2147483648
  %v703 = vxor.u32 %v593, 2147483648
  %v704 = vxor.u32 %v596, 2147483648
  %v705 = vxor.u32 %v601, 2147483648
  %v706 = vxor.u32 %v604, 2147483648
  %v707 = vxor.u32 %v609, 2147483648
  %v708 = vxor.u32 %v612, 2147483648
  %v709 = vxor.u32 %v617, 2147483648
  %v710 = vxor.u32 %v620, 2147483648
  %v711 = vxor.u32 %v625, 2147483648
  %v712 = vxor.u32 %v628, 2147483648
  %v713 = vxor.u32 %v633, 2147483648
  %v714 = vxor.u32 %v636, 2147483648
  %v715 = vxor.u32 %v641, 2147483648
  %v716 = vxor.u32 %v644, 2147483648
  %v717 = vxor.u32 %v649, 2147483648
  %v718 = vxor.u32 %v652, 2147483648
  %v719 = vmul.f32 %v655, 1.442695
  %v720 = vpow.pop %v719
  %v721 = vmul.f32 %v656, 1.442695
  %v722 = vpow.pop %v721
  %v723 = vmul.f32 %v657, 1.442695
  %v724 = vpow.pop %v723
  %v725 = vmul.f32 %v658, 1.442695
  %v726 = vpow.pop %v725
  %v727 = vmul.f32 %v659, 1.442695
  %v728 = vpow.pop %v727
  %v729 = vmul.f32 %v660, 1.442695
  %v730 = vpow.pop %v729
  %v731 = vmul.f32 %v661, 1.442695
  %v732 = vpow.pop %v731
  %v733 = vmul.f32 %v662, 1.442695
  %v734 = vpow.pop %v733
  %v735 = vmul.f32 %v663, 1.442695
  %v736 = vpow.pop %v735
  %v737 = vmul.f32 %v664, 1.442695
  %v738 = vpow.pop %v737
  %v739 = vmul.f32 %v665, 1.442695
  %v740 = vpow.pop %v739
  %v741 = vmul.f32 %v666, 1.442695
  %v742 = vpow.pop %v741
  %v743 = vmul.f32 %v667, 1.442695
  %v744 = vpow.pop %v743
  %v745 = vmul.f32 %v668, 1.442695
  %v746 = vpow.pop %v745
  %v747 = vmul.f32 %v669, 1.442695
  %v748 = vpow.pop %v747
  %v749 = vmul.f32 %v670, 1.442695
  %v750 = vpow.pop %v749
  %v751 = vmul.f32 %v671, 1.442695
  %v752 = vpow.pop %v751
  %v753 = vmul.f32 %v672, 1.442695
  %v754 = vpow.pop %v753
  %v755 = vmul.f32 %v673, 1.442695
  %v756 = vpow.pop %v755
  %v757 = vmul.f32 %v674, 1.442695
  %v758 = vpow.pop %v757
  %v759 = vmul.f32 %v675, 1.442695
  %v760 = vpow.pop %v759
  %v761 = vmul.f32 %v676, 1.442695
  %v762 = vpow.pop %v761
  %v763 = vmul.f32 %v677, 1.442695
  %v764 = vpow.pop %v763
  %v765 = vmul.f32 %v678, 1.442695
  %v766 = vpow.pop %v765
  %v767 = vmul.f32 %v679, 1.442695
  %v768 = vpow.pop %v767
  %v769 = vmul.f32 %v680, 1.442695
  %v770 = vpow.pop %v769
  %v771 = vmul.f32 %v681, 1.442695
  %v772 = vpow.pop %v771
  %v773 = vmul.f32 %v682, 1.442695
  %v774 = vpow.pop %v773
  %v775 = vmul.f32 %v683, 1.442695
  %v776 = vpow.pop %v775
  %v777 = vmul.f32 %v684, 1.442695
  %v778 = vpow.pop %v777
  %v779 = vmul.f32 %v685, 1.442695
  %v780 = vpow.pop %v779
  %v781 = vmul.f32 %v686, 1.442695
  %v782 = vpow.pop %v781
  %v783 = vmul.f32 %v687, 1.442695
  %v784 = vpow.pop %v783
  %v785 = vmul.f32 %v688, 1.442695
  %v786 = vpow.pop %v785
  %v787 = vmul.f32 %v689, 1.442695
  %v788 = vpow.pop %v787
  %v789 = vmul.f32 %v690, 1.442695
  %v790 = vpow.pop %v789
  %v791 = vmul.f32 %v691, 1.442695
  %v792 = vpow.pop %v791
  %v793 = vmul.f32 %v692, 1.442695
  %v794 = vpow.pop %v793
  %v795 = vmul.f32 %v693, 1.442695
  %v796 = vpow.pop %v795
  %v797 = vmul.f32 %v694, 1.442695
  %v798 = vpow.pop %v797
  %v799 = vmul.f32 %v695, 1.442695
  %v800 = vpow.pop %v799
  %v801 = vmul.f32 %v696, 1.442695
  %v802 = vpow.pop %v801
  %v803 = vmul.f32 %v697, 1.442695
  %v804 = vpow.pop %v803
  %v805 = vmul.f32 %v698, 1.442695
  %v806 = vpow.pop %v805
  %v807 = vmul.f32 %v699, 1.442695
  %v808 = vpow.pop %v807
  %v809 = vmul.f32 %v700, 1.442695
  %v810 = vpow.pop %v809
  %v811 = vmul.f32 %v701, 1.442695
  %v812 = vpow.pop %v811
  %v813 = vmul.f32 %v702, 1.442695
  %v814 = vpow.pop %v813
  %v815 = vmul.f32 %v703, 1.442695
  %v816 = vpow.pop %v815
  %v817 = vmul.f32 %v704, 1.442695
  %v818 = vpow.pop %v817
  %v819 = vmul.f32 %v705, 1.442695
  %v820 = vpow.pop %v819
  %v821 = vmul.f32 %v706, 1.442695
  %v822 = vpow.pop %v821
  %v823 = vmul.f32 %v707, 1.442695
  %v824 = vpow.pop %v823
  %v825 = vmul.f32 %v708, 1.442695
  %v826 = vpow.pop %v825
  %v827 = vmul.f32 %v709, 1.442695
  %v828 = vpow.pop %v827
  %v829 = vmul.f32 %v710, 1.442695
  %v830 = vpow.pop %v829
  %v831 = vmul.f32 %v711, 1.442695
  %v832 = vpow.pop %v831
  %v833 = vmul.f32 %v712, 1.442695
  %v834 = vpow.pop %v833
  %v835 = vmul.f32 %v713, 1.442695
  %v836 = vpow.pop %v835
  %v837 = vmul.f32 %v714, 1.442695
  %v838 = vpow.pop %v837
  %v839 = vmul.f32 %v715, 1.442695
  %v840 = vpow.pop %v839
  %v841 = vmul.f32 %v716, 1.442695
  %v842 = vpow.pop %v841
  %v843 = vmul.f32 %v717, 1.442695
  %v844 = vpow.pop %v843
  %v845 = vmul.f32 %v718, 1.442695
  %v846 = vpow.pop %v845
  %v847 = vadd.f32 %v720, 1.0
  %v848 = vadd.f32 %v722, 1.0
  %v849 = vadd.f32 %v724, 1.0
  %v850 = vadd.f32 %v726, 1.0
  %v851 = vadd.f32 %v728, 1.0
  %v852 = vadd.f32 %v730, 1.0
  %v853 = vadd.f32 %v732, 1.0
  %v854 = vadd.f32 %v734, 1.0
  %v855 = vadd.f32 %v736, 1.0
  %v856 = vadd.f32 %v738, 1.0
  %v857 = vadd.f32 %v740, 1.0
  %v858 = vadd.f32 %v742, 1.0
  %v859 = vadd.f32 %v744, 1.0
  %v860 = vadd.f32 %v746, 1.0
  %v861 = vadd.f32 %v748, 1.0
  %v862 = vadd.f32 %v750, 1.0
  %v863 = vadd.f32 %v752, 1.0
  %v864 = vadd.f32 %v754, 1.0
  %v865 = vadd.f32 %v756, 1.0
  %v866 = vadd.f32 %v758, 1.0
  %v867 = vadd.f32 %v760, 1.0
  %v868 = vadd.f32 %v762, 1.0
  %v869 = vadd.f32 %v764, 1.0
  %v870 = vadd.f32 %v766, 1.0
  %v871 = vadd.f32 %v768, 1.0
  %v872 = vadd.f32 %v770, 1.0
  %v873 = vadd.f32 %v772, 1.0
  %v874 = vadd.f32 %v774, 1.0
  %v875 = vadd.f32 %v776, 1.0
  %v876 = vadd.f32 %v778, 1.0
  %v877 = vadd.f32 %v780, 1.0
  %v878 = vadd.f32 %v782, 1.0
  %v879 = vadd.f32 %v784, 1.0
  %v880 = vadd.f32 %v786, 1.0
  %v881 = vadd.f32 %v788, 1.0
  %v882 = vadd.f32 %v790, 1.0
  %v883 = vadd.f32 %v792, 1.0
  %v884 = vadd.f32 %v794, 1.0
  %v885 = vadd.f32 %v796, 1.0
  %v886 = vadd.f32 %v798, 1.0
  %v887 = vadd.f32 %v800, 1.0
  %v888 = vadd.f32 %v802, 1.0
  %v889 = vadd.f32 %v804, 1.0
  %v890 = vadd.f32 %v806, 1.0
  %v891 = vadd.f32 %v808, 1.0
  %v892 = vadd.f32 %v810, 1.0
  %v893 = vadd.f32 %v812, 1.0
  %v894 = vadd.f32 %v814, 1.0
  %v895 = vadd.f32 %v816, 1.0
  %v896 = vadd.f32 %v818, 1.0
  %v897 = vadd.f32 %v820, 1.0
  %v898 = vadd.f32 %v822, 1.0
  %v899 = vadd.f32 %v824, 1.0
  %v900 = vadd.f32 %v826, 1.0
  %v901 = vadd.f32 %v828, 1.0
  %v902 = vadd.f32 %v830, 1.0
  %v903 = vadd.f32 %v832, 1.0
  %v904 = vadd.f32 %v834, 1.0
  %v905 = vadd.f32 %v836, 1.0
  %v906 = vadd.f32 %v838, 1.0
  %v907 = vadd.f32 %v840, 1.0
  %v908 = vadd.f32 %v842, 1.0
  %v909 = vadd.f32 %v844, 1.0
  %v910 = vadd.f32 %v846, 1.0
  %v911 = vrcp.pop %v847
  %v912 = vmul.f32 1.0, %v911
  %v913 = vrcp.pop %v848
  %v914 = vmul.f32 1.0, %v913
  %v915 = vrcp.pop %v849
  %v916 = vmul.f32 1.0, %v915
  %v917 = vrcp.pop %v850
  %v918 = vmul.f32 1.0, %v917
  %v919 = vrcp.pop %v851
  %v920 = vmul.f32 1.0, %v919
  %v921 = vrcp.pop %v852
  %v922 = vmul.f32 1.0, %v921
  %v923 = vrcp.pop %v853
  %v924 = vmul.f32 1.0, %v923
  %v925 = vrcp.pop %v854
  %v926 = vmul.f32 1.0, %v925
  %v927 = vrcp.pop %v855
  %v928 = vmul.f32 1.0, %v927
  %v929 = vrcp.pop %v856
  %v930 = vmul.f32 1.0, %v929
  %v931 = vrcp.pop %v857
  %v932 = vmul.f32 1.0, %v931
  %v933 = vrcp.pop %v858
  %v934 = vmul.f32 1.0, %v933
  %v935 = vrcp.pop %v859
  %v936 = vmul.f32 1.0, %v935
  %v937 = vrcp.pop %v860
  %v938 = vmul.f32 1.0, %v937
  %v939 = vrcp.pop %v861
  %v940 = vmul.f32 1.0, %v939
  %v941 = vrcp.pop %v862
  %v942 = vmul.f32 1.0, %v941
  %v943 = vrcp.pop %v863
  %v944 = vmul.f32 1.0, %v943
  %v945 = vrcp.pop %v864
  %v946 = vmul.f32 1.0, %v945
  %v947 = vrcp.pop %v865
  %v948 = vmul.f32 1.0, %v947
  %v949 = vrcp.pop %v866
  %v950 = vmul.f32 1.0, %v949
  %v951 = vrcp.pop %v867
  %v952 = vmul.f32 1.0, %v951
  %v953 = vrcp.pop %v868
  %v954 = vmul.f32 1.0, %v953
  %v955 = vrcp.pop %v869
  %v956 = vmul.f32 1.0, %v955
  %v957 = vrcp.pop %v870
  %v958 = vmul.f32 1.0, %v957
  %v959 = vrcp.pop %v871
  %v960 = vmul.f32 1.0, %v959
  %v961 = vrcp.pop %v872
  %v962 = vmul.f32 1.0, %v961
  %v963 = vrcp.pop %v873
  %v964 = vmul.f32 1.0, %v963
  %v965 = vrcp.pop %v874
  %v966 = vmul.f32 1.0, %v965
  %v967 = vrcp.pop %v875
  %v968 = vmul.f32 1.0, %v967
  %v969 = vrcp.pop %v876
  %v970 = vmul.f32 1.0, %v969
  %v971 = vrcp.pop %v877
  %v972 = vmul.f32 1.0, %v971
  %v973 = vrcp.pop %v878
  %v974 = vmul.f32 1.0, %v973
  %v975 = vrcp.pop %v879
  %v976 = vmul.f32 1.0, %v975
  %v977 = vrcp.pop %v880
  %v978 = vmul.f32 1.0, %v977
  %v979 = vrcp.pop %v881
  %v980 = vmul.f32 1.0, %v979
  %v981 = vrcp.pop %v882
  %v982 = vmul.f32 1.0, %v981
  %v983 = vrcp.pop %v883
  %v984 = vmul.f32 1.0, %v983
  %v985 = vrcp.pop %v884
  %v986 = vmul.f32 1.0, %v985
  %v987 = vrcp.pop %v885
  %v988 = vmul.f32 1.0, %v987
  %v989 = vrcp.pop %v886
  %v990 = vmul.f32 1.0, %v989
  %v991 = vrcp.pop %v887
  %v992 = vmul.f32 1.0, %v991
  %v993 = vrcp.pop %v888
  %v994 = vmul.f32 1.0, %v993
  %v995 = vrcp.pop %v889
  %v996 = vmul.f32 1.0, %v995
  %v997 = vrcp.pop %v890
  %v998 = vmul.f32 1.0, %v997
  %v999 = vrcp.pop %v891
  %v1000 = vmul.f32 1.0, %v999
  %v1001 = vrcp.pop %v892
  %v1002 = vmul.f32 1.0, %v1001
  %v1003 = vrcp.pop %v893
  %v1004 = vmul.f32 1.0, %v1003
  %v1005 = vrcp.pop %v894
  %v1006 = vmul.f32 1.0, %v1005
  %v1007 = vrcp.pop %v895
  %v1008 = vmul.f32 1.0, %v1007
  %v1009 = vrcp.pop %v896
  %v1010 = vmul.f32 1.0, %v1009
  %v1011 = vrcp.pop %v897
  %v1012 = vmul.f32 1.0, %v1011
  %v1013 = vrcp.pop %v898
  %v1014 = vmul.f32 1.0, %v1013
  %v1015 = vrcp.pop %v899
  %v1016 = vmul.f32 1.0, %v1015
  %v1017 = vrcp.pop %v900
  %v1018 = vmul.f32 1.0, %v1017
  %v1019 = vrcp.pop %v901
  %v1020 = vmul.f32 1.0, %v1019
  %v1021 = vrcp.pop %v902
  %v1022 = vmul.f32 1.0, %v1021
  %v1023 = vrcp.pop %v903
  %v1024 = vmul.f32 1.0, %v1023
  %v1025 = vrcp.pop %v904
  %v1026 = vmul.f32 1.0, %v1025
  %v1027 = vrcp.pop %v905
  %v1028 = vmul.f32 1.0, %v1027
  %v1029 = vrcp.pop %v906
  %v1030 = vmul.f32 1.0, %v1029
  %v1031 = vrcp.pop %v907
  %v1032 = vmul.f32 1.0, %v1031
  %v1033 = vrcp.pop %v908
  %v1034 = vmul.f32 1.0, %v1033
  %v1035 = vrcp.pop %v909
  %v1036 = vmul.f32 1.0, %v1035
  %v1037 = vrcp.pop %v910
  %v1038 = vmul.f32 1.0, %v1037
  %v1039 = vmul.f32 %v401, %v912
  %v1040 = vmul.f32 %v404, %v914
  %v1041 = vmul.f32 %v409, %v916
  %v1042 = vmul.f32 %v412, %v918
  %v1043 = vmul.f32 %v417, %v920
  %v1044 = vmul.f32 %v420, %v922
  %v1045 = vmul.f32 %v425, %v924
  %v1046 = vmul.f32 %v428, %v926
  %v1047 = vmul.f32 %v433, %v928
  %v1048 = vmul.f32 %v436, %v930
  %v1049 = vmul.f32 %v441, %v932
  %v1050 = vmul.f32 %v444, %v934
  %v1051 = vmul.f32 %v449, %v936
  %v1052 = vmul.f32 %v452, %v938
  %v1053 = vmul.f32 %v457, %v940
  %v1054 = vmul.f32 %v460, %v942
  %v1055 = vmul.f32 %v465, %v944
  %v1056 = vmul.f32 %v468, %v946
  %v1057 = vmul.f32 %v473, %v948
  %v1058 = vmul.f32 %v476, %v950
  %v1059 = vmul.f32 %v481, %v952
  %v1060 = vmul.f32 %v484, %v954
  %v1061 = vmul.f32 %v489, %v956
  %v1062 = vmul.f32 %v492, %v958
  %v1063 = vmul.f32 %v497, %v960
  %v1064 = vmul.f32 %v500, %v962
  %v1065 = vmul.f32 %v505, %v964
  %v1066 = vmul.f32 %v508, %v966
  %v1067 = vmul.f32 %v513, %v968
  %v1068 = vmul.f32 %v516, %v970
  %v1069 = vmul.f32 %v521, %v972
  %v1070 = vmul.f32 %v524, %v974
  %v1071 = vmul.f32 %v529, %v976
  %v1072 = vmul.f32 %v532, %v978
  %v1073 = vmul.f32 %v537, %v980
  %v1074 = vmul.f32 %v540, %v982
  %v1075 = vmul.f32 %v545, %v984
  %v1076 = vmul.f32 %v548, %v986
  %v1077 = vmul.f32 %v553, %v988
  %v1078 = vmul.f32 %v556, %v990
  %v1079 = vmul.f32 %v561, %v992
  %v1080 = vmul.f32 %v564, %v994
  %v1081 = vmul.f32 %v569, %v996
  %v1082 = vmul.f32 %v572, %v998
  %v1083 = vmul.f32 %v577, %v1000
  %v1084 = vmul.f32 %v580, %v1002
  %v1085 = vmul.f32 %v585, %v1004
  %v1086 = vmul.f32 %v588, %v1006
  %v1087 = vmul.f32 %v593, %v1008
  %v1088 = vmul.f32 %v596, %v1010
  %v1089 = vmul.f32 %v601, %v1012
  %v1090 = vmul.f32 %v604, %v1014
  %v1091 = vmul.f32 %v609, %v1016
  %v1092 = vmul.f32 %v612, %v1018
  %v1093 = vmul.f32 %v617, %v1020
  %v1094 = vmul.f32 %v620, %v1022
  %v1095 = vmul.f32 %v625, %v1024
  %v1096 = vmul.f32 %v628, %v1026
  %v1097 = vmul.f32 %v633, %v1028
  %v1098 = vmul.f32 %v636, %v1030
  %v1099 = vmul.f32 %v641, %v1032
  %v1100 = vmul.f32 %v644, %v1034
  %v1101 = vmul.f32 %v649, %v1036
  %v1102 = vmul.f32 %v652, %v1038
  %v1103 = vld [vmem:[%s2] sm:$0xff]
  %v1104 = vld [vmem:[%s2 + $0x8] sm:$0xff]
  %v1105 = vld [vmem:[%s2 + $0x10] sm:$0xff]
  %v1106 = vld [vmem:[%s2 + $0x18] sm:$0xff]
  %1107 = vmatprep.subr.mxu0 0.0
  %1108 = vmatpush1.msra.mxu0 %v1039
  %1109 = vmatprep.subr.mxu0 0.0
  %1110 = vmatpush1.msra.mxu0 %v1040
  %1111 = vmatprep.subr.mxu0 0.0
  %1112 = vmatpush1.msra.mxu0 %v1041
  %1113 = vmatprep.subr.mxu0 0.0
  %1114 = vmatpush1.msra.mxu0 %v1042
  %1115 = vmatprep.subr.mxu0 0.0
  %1116 = vmatpush1.msra.mxu0 %v1043
  %1117 = vmatprep.subr.mxu0 0.0
  %1118 = vmatpush1.msra.mxu0 %v1044
  %1119 = vmatprep.subr.mxu0 0.0
  %1120 = vmatpush1.msra.mxu0 %v1045
  %1121 = vmatprep.subr.mxu0 0.0
  %1122 = vmatpush1.msra.mxu0 %v1046
  %1123 = vmatprep.subr.mxu0 0.0
  %1124 = vmatpush1.msra.mxu0 %v1047
  %1125 = vmatprep.subr.mxu0 0.0
  %1126 = vmatpush1.msra.mxu0 %v1048
  %1127 = vmatprep.subr.mxu0 0.0
  %1128 = vmatpush1.msra.mxu0 %v1049
  %1129 = vmatprep.subr.mxu0 0.0
  %1130 = vmatpush1.msra.mxu0 %v1050
  %1131 = vmatprep.subr.mxu0 0.0
  %1132 = vmatpush1.msra.mxu0 %v1051
  %1133 = vmatprep.subr.mxu0 0.0
  %1134 = vmatpush1.msra.mxu0 %v1052
  %1135 = vmatprep.subr.mxu0 0.0
  %1136 = vmatpush1.msra.mxu0 %v1053
  %1137 = vmatprep.subr.mxu0 0.0
  %1138 = vmatpush1.msra.mxu0 %v1054
  %1139 = vmatprep.subr.mxu0 0.0
  %1140 = vmatpush1.msra.mxu0 %v1055
  %1141 = vmatprep.subr.mxu0 0.0
  %1142 = vmatpush1.msra.mxu0 %v1056
  %1143 = vmatprep.subr.mxu0 0.0
  %1144 = vmatpush1.msra.mxu0 %v1057
  %1145 = vmatprep.subr.mxu0 0.0
  %1146 = vmatpush1.msra.mxu0 %v1058
  %1147 = vmatprep.subr.mxu0 0.0
  %1148 = vmatpush1.msra.mxu0 %v1059
  %1149 = vmatprep.subr.mxu0 0.0
  %1150 = vmatpush1.msra.mxu0 %v1060
  %1151 = vmatprep.subr.mxu0 0.0
  %1152 = vmatpush1.msra.mxu0 %v1061
  %1153 = vmatprep.subr.mxu0 0.0
  %1154 = vmatpush1.msra.mxu0 %v1062
  %1155 = vmatprep.subr.mxu0 0.0
  %1156 = vmatpush1.msra.mxu0 %v1063
  %1157 = vmatprep.subr.mxu0 0.0
  %1158 = vmatpush1.msra.mxu0 %v1064
  %1159 = vmatprep.subr.mxu0 0.0
  %1160 = vmatpush1.msra.mxu0 %v1065
  %1161 = vmatprep.subr.mxu0 0.0
  %1162 = vmatpush1.msra.mxu0 %v1066
  %1163 = vmatprep.subr.mxu0 0.0
  %1164 = vmatpush1.msra.mxu0 %v1067
  %1165 = vmatprep.subr.mxu0 0.0
  %1166 = vmatpush1.msra.mxu0 %v1068
  %1167 = vmatprep.subr.mxu0 0.0
  %1168 = vmatpush1.msra.mxu0 %v1069
  %1169 = vmatprep.subr.mxu0 0.0
  %1170 = vmatpush1.msra.mxu0 %v1070
  %1171 = vmatprep.mubr.f32.mxu0 %v1104
  %1172 = vmatmul.mubr.f32.gmra.mrb[0].mxu0 %v1103
  %v1173 = vpop.f32.mrb[0].mxu0
  %v1174 = vadd.f32 0.0, %v1173
  %v1175 = vpop.f32.mrb[0].mxu0
  %1176 = vdwg.mxu0
  %1177 = vmatprep.subr.mxu0 0.0
  %1178 = vmatpush1.msra.mxu0 %v1071
  %1179 = vmatprep.subr.mxu0 0.0
  %1180 = vmatpush1.msra.mxu0 %v1072
  %1181 = vmatprep.subr.mxu0 0.0
  %1182 = vmatpush1.msra.mxu0 %v1073
  %1183 = vmatprep.subr.mxu0 0.0
  %1184 = vmatpush1.msra.mxu0 %v1074
  %1185 = vmatprep.subr.mxu0 0.0
  %1186 = vmatpush1.msra.mxu0 %v1075
  %1187 = vmatprep.subr.mxu0 0.0
  %1188 = vmatpush1.msra.mxu0 %v1076
  %1189 = vmatprep.subr.mxu0 0.0
  %1190 = vmatpush1.msra.mxu0 %v1077
  %1191 = vmatprep.subr.mxu0 0.0
  %1192 = vmatpush1.msra.mxu0 %v1078
  %1193 = vmatprep.subr.mxu0 0.0
  %1194 = vmatpush1.msra.mxu0 %v1079
  %1195 = vmatprep.subr.mxu0 0.0
  %1196 = vmatpush1.msra.mxu0 %v1080
  %1197 = vmatprep.subr.mxu0 0.0
  %1198 = vmatpush1.msra.mxu0 %v1081
  %1199 = vmatprep.subr.mxu0 0.0
  %1200 = vmatpush1.msra.mxu0 %v1082
  %1201 = vmatprep.subr.mxu0 0.0
  %1202 = vmatpush1.msra.mxu0 %v1083
  %1203 = vmatprep.subr.mxu0 0.0
  %1204 = vmatpush1.msra.mxu0 %v1084
  %1205 = vmatprep.subr.mxu0 0.0
  %1206 = vmatpush1.msra.mxu0 %v1085
  %1207 = vmatprep.subr.mxu0 0.0
  %1208 = vmatpush1.msra.mxu0 %v1086
  %1209 = vmatprep.subr.mxu0 0.0
  %1210 = vmatpush1.msra.mxu0 %v1087
  %1211 = vmatprep.subr.mxu0 0.0
  %1212 = vmatpush1.msra.mxu0 %v1088
  %1213 = vmatprep.subr.mxu0 0.0
  %1214 = vmatpush1.msra.mxu0 %v1089
  %1215 = vmatprep.subr.mxu0 0.0
  %1216 = vmatpush1.msra.mxu0 %v1090
  %1217 = vmatprep.subr.mxu0 0.0
  %1218 = vmatpush1.msra.mxu0 %v1091
  %1219 = vmatprep.subr.mxu0 0.0
  %1220 = vmatpush1.msra.mxu0 %v1092
  %1221 = vmatprep.subr.mxu0 0.0
  %1222 = vmatpush1.msra.mxu0 %v1093
  %1223 = vmatprep.subr.mxu0 0.0
  %1224 = vmatpush1.msra.mxu0 %v1094
  %1225 = vmatprep.subr.mxu0 0.0
  %1226 = vmatpush1.msra.mxu0 %v1095
  %1227 = vmatprep.subr.mxu0 0.0
  %1228 = vmatpush1.msra.mxu0 %v1096
  %1229 = vmatprep.subr.mxu0 0.0
  %1230 = vmatpush1.msra.mxu0 %v1097
  %1231 = vmatprep.subr.mxu0 0.0
  %1232 = vmatpush1.msra.mxu0 %v1098
  %1233 = vmatprep.subr.mxu0 0.0
  %1234 = vmatpush1.msra.mxu0 %v1099
  %1235 = vmatprep.subr.mxu0 0.0
  %1236 = vmatpush1.msra.mxu0 %v1100
  %1237 = vmatprep.subr.mxu0 0.0
  %1238 = vmatpush1.msra.mxu0 %v1101
  %1239 = vmatprep.subr.mxu0 0.0
  %1240 = vmatpush1.msra.mxu0 %v1102
  %1241 = vmatprep.mubr.f32.mxu0 %v1106
  %1242 = vmatmul.mubr.f32.gmra.mrb[0].mxu0 %v1105
  %v1243 = vpop.f32.mrb[0].mxu0
  %v1244 = vadd.f32 %v1174, %v1243
  %v1245 = vpop.f32.mrb[0].mxu0
  %1246 = vdwg.mxu0
  %v1247 = vld [vmem:[%s3] sm:$0xff]
  %v1248 = vld [vmem:[%s3 + $0x8] sm:$0xff]
  %v1249 = vld [vmem:[%s3 + $0x10] sm:$0xff]
  %v1250 = vld [vmem:[%s3 + $0x18] sm:$0xff]
  %v1251 = vld [vmem:[%s3 + $0x20] sm:$0xff]
  %v1252 = vld [vmem:[%s3 + $0x28] sm:$0xff]
  %v1253 = vld [vmem:[%s3 + $0x30] sm:$0xff]
  %v1254 = vld [vmem:[%s3 + $0x38] sm:$0xff]
  %v1255 = vld [vmem:[%s4] sm:$0x1]
  %v1257 = vlaneseq
  %v1258 = vshrl.u32 %v1257, 7
  %v1259 = vsub.s32 0, %v1258
  %v1260 = vrot.slane %v1255, %v1259
  %vm1262 = vcmask 523264
  %v1264 = vsel %vm1262, %v1244, 0
  %1266 = vmatprep.subr.mxu0 0.0
  %1267 = vmatpush1.msra.mxu0 %v1247
  %1268 = vmatprep.subr.mxu0 0.0
  %1269 = vmatpush1.msra.mxu0 %v1248
  %1270 = vmatprep.subr.mxu0 0.0
  %1271 = vmatpush1.msra.mxu0 %v1249
  %1272 = vmatprep.subr.mxu0 0.0
  %1273 = vmatpush1.msra.mxu0 %v1250
  %1274 = vmatprep.subr.mxu0 0.0
  %1275 = vmatpush1.msra.mxu0 %v1251
  %1276 = vmatprep.subr.mxu0 0.0
  %1277 = vmatpush1.msra.mxu0 %v1252
  %1278 = vmatprep.subr.mxu0 0.0
  %1279 = vmatpush1.msra.mxu0 %v1253
  %1280 = vmatprep.subr.mxu0 0.0
  %1281 = vmatpush1.msra.mxu0 %v1254
  %1282 = vmatprep.subr.mxu0 0.0
  %1283 = vmatpush1.msra.mxu0 0.0
  %1284 = vmatprep.subr.mxu0 0.0
  %1285 = vmatpush1.msra.mxu0 0.0
  %1286 = vmatprep.subr.mxu0 0.0
  %1287 = vmatpush1.msra.mxu0 0.0
  %1288 = vmatprep.subr.mxu0 0.0
  %1289 = vmatpush1.msra.mxu0 0.0
  %1290 = vmatprep.subr.mxu0 0.0
  %1291 = vmatpush1.msra.mxu0 0.0
  %1292 = vmatprep.subr.mxu0 0.0
  %1293 = vmatpush1.msra.mxu0 0.0
  %1294 = vmatprep.subr.mxu0 0.0
  %1295 = vmatpush1.msra.mxu0 0.0
  %1296 = vmatprep.subr.mxu0 0.0
  %1297 = vmatpush1.msra.mxu0 0.0
  %1298 = vmatprep.subr.mxu0 0.0
  %1299 = vmatpush1.msra.mxu0 0.0
  %1300 = vmatprep.subr.mxu0 0.0
  %1301 = vmatpush1.msra.mxu0 0.0
  %1302 = vmatprep.subr.mxu0 0.0
  %1303 = vmatpush1.msra.mxu0 0.0
  %1304 = vmatprep.subr.mxu0 0.0
  %1305 = vmatpush1.msra.mxu0 0.0
  %1306 = vmatprep.subr.mxu0 0.0
  %1307 = vmatpush1.msra.mxu0 0.0
  %1308 = vmatprep.subr.mxu0 0.0
  %1309 = vmatpush1.msra.mxu0 0.0
  %1310 = vmatprep.subr.mxu0 0.0
  %1311 = vmatpush1.msra.mxu0 0.0
  %1312 = vmatprep.subr.mxu0 0.0
  %1313 = vmatpush1.msra.mxu0 0.0
  %1314 = vmatprep.subr.mxu0 0.0
  %1315 = vmatpush1.msra.mxu0 0.0
  %1316 = vmatprep.subr.mxu0 0.0
  %1317 = vmatpush1.msra.mxu0 0.0
  %1318 = vmatprep.subr.mxu0 0.0
  %1319 = vmatpush1.msra.mxu0 0.0
  %1320 = vmatprep.subr.mxu0 0.0
  %1321 = vmatpush1.msra.mxu0 0.0
  %1322 = vmatprep.subr.mxu0 0.0
  %1323 = vmatpush1.msra.mxu0 0.0
  %1324 = vmatprep.subr.mxu0 0.0
  %1325 = vmatpush1.msra.mxu0 0.0
  %1326 = vmatprep.subr.mxu0 0.0
  %1327 = vmatpush1.msra.mxu0 0.0
  %1328 = vmatprep.subr.mxu0 0.0
  %1329 = vmatpush1.msra.mxu0 0.0
  %1330 = vmatprep.mubr.f32.mxu0 0.0
  %1331 = vmatmul.mubr.f32.gmra.mrb[0].mxu0 %v1264
  %v1332 = vpop.f32.mrb[0].mxu0
  %v1333 = vadd.f32 %v1260, %v1332
  %v1334 = vpop.f32.mrb[0].mxu0
  %1335 = vdwg.mxu0
  %v1336 = vmul.f32 %v1333, %v1333
  %1337 = vadd.xlane.f32.xlu0 %v1336
  %v1338 = vpop.xlane.xlu0 %1337
  %v1339 = vmax.f32 %v1338, 1e-24
  %v1340 = vrsqrt.pop %v1339
  %v1341 = vmul.f32 %v1333, %v1340
  %1342 = vst [vmem:[%s5] sm:$0xff] %v1341
  // Predicated region
  $region22: #{capsule_verification_forward.1} parent=0 // pred_check
    _
  $region23: #{capsule_verification_forward.1} parent=0 // pred_check_branch
    %1344 = sbr.rel (0) target = $region25
  $region24: #{capsule_verification_forward.1} parent=0 // pred_region
    _
  $region25: #{capsule_verification_forward.1} parent=0 // pred_fallthru
    _
  // Predicated region
  $region26: #{capsule_verification_forward.1} parent=0 // pred_check
    _
  $region27: #{capsule_verification_forward.1} parent=0 // pred_check_branch
    %1346 = sbr.rel (0) target = $region29
  $region28: #{capsule_verification_forward.1} parent=0 // pred_region
    _
  $region29: #{capsule_verification_forward.1} parent=0 // pred_fallthru
    _

</llo_original>
